<compile_context>
chip_gen: v7x
topology: tpu7x:2x2x1
jax: 0.10.0
libtpu: 0.0.40
codegen_flags: <defaults>
</compile_context>

<pallas_src>
import functools

import jax
import jax.numpy as jnp
from jax.experimental import pallas as pl
from jax.experimental.pallas import tpu as pltpu


def _round_up(x: int, m: int) -> int:
    return ((x + m - 1) // m) * m


def _active_model_kernel(x_ref, u_ref, w1_ref, w2_ref, b_ref, o_ref):
    # VPU ReLU on each party's activations, then two native-layout MXU matmuls
    # against the pre-transposed weight halves (no concat, no transpose/relayout
    # inside the kernel), accumulate in f32, add bias, store (Bt, C) tile.
    x = jnp.maximum(x_ref[...], 0.0)                                  # (Bt, D)
    u = jnp.maximum(u_ref[...], 0.0)                                  # (Bt, D)
    acc = jnp.dot(x, w1_ref[...], preferred_element_type=jnp.float32)
    acc = acc + jnp.dot(u, w2_ref[...], preferred_element_type=jnp.float32)
    o_ref[...] = (acc + b_ref[...]).astype(o_ref.dtype)               # bias (1, C)


def prepare_active_model_params(weight, bias):
    """One-time param prep: split (C, 2D) weight into two (D, C) halves + (1, C) bias.

    Call once at init; pass the results to `active_model_forward` so the
    per-call path contains only the kernel (no transpose/pad XLA ops).
    """
    C, KD = weight.shape
    assert KD % 2 == 0
    D = KD // 2
    w1 = jnp.asarray(weight[:, :D]).T            # (D, C)
    w2 = jnp.asarray(weight[:, D:]).T            # (D, C)
    b2 = jnp.asarray(bias).reshape(1, C)         # (1, C)
    return w1, w2, b2


@functools.partial(jax.jit, static_argnames=("block_b",))
def active_model_forward(x, u_b, w1, w2, b2, *, block_b=1024):
    """x: (B, D), u_b: (B, D), w1/w2: (D, C), b2: (1, C) -> logits (B, C)."""
    B, D = x.shape
    C = w1.shape[1]
    assert u_b.shape == (B, D)
    assert w1.shape == (D, C) and w2.shape == (D, C) and b2.shape == (1, C)

    # Batch tile: multiple of 8 sublanes, big enough to amortize per-step
    # overhead, but capped so v7x's two TensorCores both get tiles when B > 8.
    Bt = min(block_b, _round_up(B, 8))
    if pl.cdiv(B, Bt) < 2 and B > 8:
        Bt = _round_up(pl.cdiv(B, 2), 8)

    grid = (pl.cdiv(B, Bt),)   # ragged last block OK: rows are independent,
                               # out-of-bounds output rows are masked on store.

    # Advisory cost estimate with true (unpadded) dims.
    flops = 2 * B * (2 * D) * C
    bytes_accessed = 4 * (2 * B * D + 2 * D * C + C + B * C)

    out = pl.pallas_call(
        _active_model_kernel,
        out_shape=jax.ShapeDtypeStruct((B, C), jnp.float32),
        grid_spec=pl.GridSpec(
            grid=grid,
            in_specs=[
                pl.BlockSpec((Bt, D), lambda i: (i, 0)),    # x tile (streams)
                pl.BlockSpec((Bt, D), lambda i: (i, 0)),    # u tile (streams)
                pl.BlockSpec((D, C), lambda i: (0, 0)),     # W1 (VMEM-resident)
                pl.BlockSpec((D, C), lambda i: (0, 0)),     # W2 (VMEM-resident)
                pl.BlockSpec((1, C), lambda i: (0, 0)),     # bias (VMEM-resident)
            ],
            out_specs=pl.BlockSpec((Bt, C), lambda i: (i, 0)),
        ),
        compiler_params=pltpu.CompilerParams(
            dimension_semantics=("parallel",)),              # shard batch tiles across TCs
        cost_estimate=pl.CostEstimate(
            flops=flops, transcendentals=0, bytes_accessed=bytes_accessed),
    )(x, u_b, w1, w2, b2)

    return out


if __name__ == "__main__":
    # Small shapes consistent with the module: input_dim=32, k=2, num_classes=8.
    B, D, C = 2, 32, 8

    key = jax.random.PRNGKey(0)
    kx, ku, kw, kb = jax.random.split(key, 4)

    x = jax.random.normal(kx, (B, D), dtype=jnp.float32)
    u_b = jax.random.normal(ku, (B, D), dtype=jnp.float32)

    # Deterministic parameter init (synthetic; matches nn.Linear shapes).
    bound = 1.0 / jnp.sqrt(2.0 * D)
    weight = jax.random.uniform(kw, (C, 2 * D), minval=-bound, maxval=bound,
                                dtype=jnp.float32)
    bias = jax.random.uniform(kb, (C,), minval=-bound, maxval=bound,
                              dtype=jnp.float32)

    # One-time param prep (outside the per-call jitted path).
    w1, w2, b2 = prepare_active_model_params(weight, bias)

    out = active_model_forward(x, u_b, w1, w2, b2)
    out = jax.block_until_ready(out)

    # Pure-JAX reference check (exact PyTorch semantics).
    ref = jnp.maximum(jnp.concatenate([x, u_b], axis=1), 0.0) @ weight.T + bias
    assert out.shape == (B, C)
    assert jnp.allclose(out, ref, atol=1e-5, rtol=1e-5)

    print("KERNEL_OK")
</pallas_src>

<mosaic_0001>
module attributes {stable_mosaic.version = 11 : i64} {
  func.func @_active_model_kernel(%arg0: i32, %arg1: memref<8x32xf32, #tpu.memory_space<vmem>>, %arg2: memref<8x32xf32, #tpu.memory_space<vmem>>, %arg3: memref<32x8xf32, #tpu.memory_space<vmem>>, %arg4: memref<32x8xf32, #tpu.memory_space<vmem>>, %arg5: memref<1x8xf32, #tpu.memory_space<vmem>>, %arg6: memref<8x8xf32, #tpu.memory_space<vmem>>) attributes {dimension_semantics = [#tpu.dimension_semantics<parallel>], iteration_bounds = array<i64: 1>, scalar_prefetch = 0 : i64, scratch_operands = 0 : i64, tpu.core_type = #tpu.core_type<tc>, window_params = [{transform_indices = @transform_0, window_bounds = array<i64: 8, 32>}, {transform_indices = @transform_1, window_bounds = array<i64: 8, 32>}, {pipeline_mode = #tpu.pipeline_mode<synchronous>, transform_indices = @transform_2, window_bounds = array<i64: 32, 8>}, {pipeline_mode = #tpu.pipeline_mode<synchronous>, transform_indices = @transform_3, window_bounds = array<i64: 32, 8>}, {pipeline_mode = #tpu.pipeline_mode<synchronous>, transform_indices = @transform_4, window_bounds = array<i64: 1, 8>}, {transform_indices = @transform_5, window_bounds = array<i64: 8, 8>}]} {
    %c0 = arith.constant 0 : index
    %c0_0 = arith.constant 0 : index
    %0 = vector.load %arg1[%c0, %c0_0] : memref<8x32xf32, #tpu.memory_space<vmem>>, vector<8x32xf32>
    %cst = arith.constant 0.000000e+00 : f32
    %1 = vector.broadcast %cst : f32 to vector<8x32xf32>
    %2 = arith.maximumf %0, %1 : vector<8x32xf32>
    %c0_1 = arith.constant 0 : index
    %c0_2 = arith.constant 0 : index
    %3 = vector.load %arg2[%c0_1, %c0_2] : memref<8x32xf32, #tpu.memory_space<vmem>>, vector<8x32xf32>
    %cst_3 = arith.constant 0.000000e+00 : f32
    %4 = vector.broadcast %cst_3 : f32 to vector<8x32xf32>
    %5 = arith.maximumf %3, %4 : vector<8x32xf32>
    %c0_4 = arith.constant 0 : index
    %c0_5 = arith.constant 0 : index
    %6 = vector.load %arg3[%c0_4, %c0_5] : memref<32x8xf32, #tpu.memory_space<vmem>>, vector<32x8xf32>
    %cst_6 = arith.constant dense<0.000000e+00> : vector<8x8xf32>
    %7 = tpu.matmul %2, %6, %cst_6 {dimension_numbers = #tpu.dot_dimension_numbers<[1], [0], [0], [1], [0, 0, 1, 1], [], []>} : vector<8x32xf32>, vector<32x8xf32>, vector<8x8xf32> -> vector<8x8xf32>
    %c0_7 = arith.constant 0 : index
    %c0_8 = arith.constant 0 : index
    %8 = vector.load %arg4[%c0_7, %c0_8] : memref<32x8xf32, #tpu.memory_space<vmem>>, vector<32x8xf32>
    %cst_9 = arith.constant dense<0.000000e+00> : vector<8x8xf32>
    %9 = tpu.matmul %5, %8, %cst_9 {dimension_numbers = #tpu.dot_dimension_numbers<[1], [0], [0], [1], [0, 0, 1, 1], [], []>} : vector<8x32xf32>, vector<32x8xf32>, vector<8x8xf32> -> vector<8x8xf32>
    %10 = arith.addf %7, %9 : vector<8x8xf32>
    %c0_10 = arith.constant 0 : index
    %c0_11 = arith.constant 0 : index
    %11 = vector.load %arg5[%c0_10, %c0_11] : memref<1x8xf32, #tpu.memory_space<vmem>>, vector<1x8xf32>
    %12 = vector.broadcast %11 : vector<1x8xf32> to vector<8x8xf32>
    %13 = arith.addf %10, %12 : vector<8x8xf32>
    %c0_12 = arith.constant 0 : index
    %c0_13 = arith.constant 0 : index
    %14 = vector.load %arg6[%c0_12, %c0_13] : memref<8x8xf32, #tpu.memory_space<vmem>>, vector<8x8xf32>
    tpu.vector_store %arg6[%c0_12, %c0_13], %13 {strides = array<i32>} : memref<8x8xf32, #tpu.memory_space<vmem>>, vector<8x8xf32>,
    return
  }
  func.func @transform_0(%arg0: i32) -> (i32, i32) {
    %c0_i32 = arith.constant 0 : i32
    %c0_i32_0 = arith.constant 0 : i32
    return %arg0, %c0_i32 : i32, i32
  }
  func.func @transform_1(%arg0: i32) -> (i32, i32) {
    %c0_i32 = arith.constant 0 : i32
    %c0_i32_0 = arith.constant 0 : i32
    return %arg0, %c0_i32 : i32, i32
  }
  func.func @transform_2(%arg0: i32) -> (i32, i32) {
    %c0_i32 = arith.constant 0 : i32
    %c0_i32_0 = arith.constant 0 : i32
    %c0_i32_1 = arith.constant 0 : i32
    return %c0_i32, %c0_i32_0 : i32, i32
  }
  func.func @transform_3(%arg0: i32) -> (i32, i32) {
    %c0_i32 = arith.constant 0 : i32
    %c0_i32_0 = arith.constant 0 : i32
    %c0_i32_1 = arith.constant 0 : i32
    return %c0_i32, %c0_i32_0 : i32, i32
  }
  func.func @transform_4(%arg0: i32) -> (i32, i32) {
    %c0_i32 = arith.constant 0 : i32
    %c0_i32_0 = arith.constant 0 : i32
    %c0_i32_1 = arith.constant 0 : i32
    return %c0_i32, %c0_i32_0 : i32, i32
  }
  func.func @transform_5(%arg0: i32) -> (i32, i32) {
    %c0_i32 = arith.constant 0 : i32
    %c0_i32_0 = arith.constant 0 : i32
    return %arg0, %c0_i32 : i32, i32
  }
}

</mosaic_0001>

<llo_original>
// kernel: active_model_forward.1
$region0: #{active_model_forward.1}
  #allocation0 [shape = 'u32[]', space=smem, size = 0x4, offset = 0x4, fixed_abs, tag = 'smem constant byte address 0x4 - core index']
  #allocation1 [shape = 'u32[144,128]{1,0:T(1,128)}', space=vmem, size = 0x12000, scoped, tag = 'internal scratch']
  %s0 = inlined_call_operand.vmem [shape: f32[2,32], index: 0, kind: input, shape index: {}]
  %s1 = inlined_call_operand.vmem [shape: f32[2,32], index: 1, kind: input, shape index: {}]
  %s2 = inlined_call_operand.vmem [shape: f32[32,8], index: 2, kind: input, shape index: {}]
  %s3 = inlined_call_operand.vmem [shape: f32[32,8], index: 3, kind: input, shape index: {}]
  %s4 = inlined_call_operand.vmem [shape: f32[1,8], index: 4, kind: input, shape index: {}]
  %s5 = inlined_call_operand.hbm [shape: f32[2,8], index: 5, kind: output, shape index: {}]
  %s6 = sld [smem:[#allocation0]]
  $region30: #{active_model_forward.1} parent=0
    _
  %s8 = ssub.s32 1, %s6
  %s9 = scalar_select 0, %s8, %s6
  $region1: #{active_model_forward.1} parent=0
    #allocation2 [shape = 'u8[4096]{0}', space=vmem, size = 0x1000, scoped, tag = 'output window, operand 0, single buffered']
    #allocation3 [shape = 's32[1]{0}', space=sflag, size = 0x4, scoped, tag = 'scoped memory for active_model_forward.1']
    %10 = vsyncpa [#allocation3], 0
    // Predicated region
    $region2: #{active_model_forward.1} parent=1 // pred_check
      _
    $region3: #{active_model_forward.1} parent=1 // pred_check_branch
      %12 = sbr.rel (0) target = $region5
    $region4: #{active_model_forward.1} parent=1 // pred_region
      _
    $region5: #{active_model_forward.1} parent=1 // pred_fallthru
      _
    // Predicated region
    $region6: #{active_model_forward.1} parent=1 // pred_check
      _
    $region7: #{active_model_forward.1} parent=1 // pred_check_branch
      %14 = sbr.rel (0) target = $region9
    $region8: #{active_model_forward.1} parent=1 // pred_region
      _
    $region9: #{active_model_forward.1} parent=1 // pred_fallthru
      _
    // Predicated region
    $region10: #{active_model_forward.1} parent=1 // pred_check
      _
    $region11: #{active_model_forward.1} parent=1 // pred_check_branch
      %16 = sbr.rel (0) target = $region13
    $region12: #{active_model_forward.1} parent=1 // pred_region
      _
    $region13: #{active_model_forward.1} parent=1 // pred_fallthru
      _
    // Predicated region
    $region14: #{active_model_forward.1} parent=1 // pred_check
      _
    $region15: #{active_model_forward.1} parent=1 // pred_check_branch
      %18 = sbr.rel (0) target = $region17
    $region16: #{active_model_forward.1} parent=1 // pred_region
      _
    $region17: #{active_model_forward.1} parent=1 // pred_fallthru
      _
    // Predicated region
    $region18: #{active_model_forward.1} parent=1 // pred_check
      _
    $region19: #{active_model_forward.1} parent=1 // pred_check_branch
      %20 = sbr.rel (0) target = $region21
    $region20: #{active_model_forward.1} parent=1 // pred_region
      _
    $region21: #{active_model_forward.1} parent=1 // pred_fallthru
      _
    %v21 = vld [vmem:[%s0] sm:$0xff]
    %v22 = vmax.f32 %v21, 0.0
    %v23 = vld [vmem:[%s1] sm:$0xff]
    %v24 = vmax.f32 %v23, 0.0
    %v25 = vld [vmem:[%s2] sm:$0xff]
    %v26 = vld [vmem:[%s2 + $0x8] sm:$0xff]
    %v27 = vld [vmem:[%s2 + $0x10] sm:$0xff]
    %v28 = vld [vmem:[%s2 + $0x18] sm:$0xff]
    %v29 = vld [vmem:[%s3] sm:$0xff]
    %v30 = vld [vmem:[%s3 + $0x8] sm:$0xff]
    %v31 = vld [vmem:[%s3 + $0x10] sm:$0xff]
    %v32 = vld [vmem:[%s3 + $0x18] sm:$0xff]
    %vm33 = vcmask 261120
    %v35 = vsel %vm33, %v24, 0
    %37 = vmatprep.subr.mxu0 0.0
    %38 = vmatpush1.msra.mxu0 %v29
    %39 = vmatprep.subr.mxu0 0.0
    %40 = vmatpush1.msra.mxu0 %v30
    %41 = vmatprep.subr.mxu0 0.0
    %42 = vmatpush1.msra.mxu0 %v31
    %43 = vmatprep.subr.mxu0 0.0
    %44 = vmatpush1.msra.mxu0 %v32
    %45 = vmatprep.subr.mxu0 0.0
    %46 = vmatpush1.msra.mxu0 0.0
    %47 = vmatprep.subr.mxu0 0.0
    %48 = vmatpush1.msra.mxu0 0.0
    %49 = vmatprep.subr.mxu0 0.0
    %50 = vmatpush1.msra.mxu0 0.0
    %51 = vmatprep.subr.mxu0 0.0
    %52 = vmatpush1.msra.mxu0 0.0
    %53 = vmatprep.subr.mxu0 0.0
    %54 = vmatpush1.msra.mxu0 0.0
    %55 = vmatprep.subr.mxu0 0.0
    %56 = vmatpush1.msra.mxu0 0.0
    %57 = vmatprep.subr.mxu0 0.0
    %58 = vmatpush1.msra.mxu0 0.0
    %59 = vmatprep.subr.mxu0 0.0
    %60 = vmatpush1.msra.mxu0 0.0
    %61 = vmatprep.subr.mxu0 0.0
    %62 = vmatpush1.msra.mxu0 0.0
    %63 = vmatprep.subr.mxu0 0.0
    %64 = vmatpush1.msra.mxu0 0.0
    %65 = vmatprep.subr.mxu0 0.0
    %66 = vmatpush1.msra.mxu0 0.0
    %67 = vmatprep.subr.mxu0 0.0
    %68 = vmatpush1.msra.mxu0 0.0
    %69 = vmatprep.subr.mxu0 0.0
    %70 = vmatpush1.msra.mxu0 0.0
    %71 = vmatprep.subr.mxu0 0.0
    %72 = vmatpush1.msra.mxu0 0.0
    %73 = vmatprep.subr.mxu0 0.0
    %74 = vmatpush1.msra.mxu0 0.0
    %75 = vmatprep.subr.mxu0 0.0
    %76 = vmatpush1.msra.mxu0 0.0
    %77 = vmatprep.subr.mxu0 0.0
    %78 = vmatpush1.msra.mxu0 0.0
    %79 = vmatprep.subr.mxu0 0.0
    %80 = vmatpush1.msra.mxu0 0.0
    %81 = vmatprep.subr.mxu0 0.0
    %82 = vmatpush1.msra.mxu0 0.0
    %83 = vmatprep.subr.mxu0 0.0
    %84 = vmatpush1.msra.mxu0 0.0
    %85 = vmatprep.subr.mxu0 0.0
    %86 = vmatpush1.msra.mxu0 0.0
    %87 = vmatprep.subr.mxu0 0.0
    %88 = vmatpush1.msra.mxu0 0.0
    %89 = vmatprep.subr.mxu0 0.0
    %90 = vmatpush1.msra.mxu0 0.0
    %91 = vmatprep.subr.mxu0 0.0
    %92 = vmatpush1.msra.mxu0 0.0
    %93 = vmatprep.subr.mxu0 0.0
    %94 = vmatpush1.msra.mxu0 0.0
    %95 = vmatprep.subr.mxu0 0.0
    %96 = vmatpush1.msra.mxu0 0.0
    %97 = vmatprep.subr.mxu0 0.0
    %98 = vmatpush1.msra.mxu0 0.0
    %99 = vmatprep.subr.mxu0 0.0
    %100 = vmatpush1.msra.mxu0 0.0
    %101 = vmatprep.mubr.f32.mxu0 0.0
    %102 = vmatmul.mubr.f32.gmra.mrb[0].mxu0 %v35
    %v103 = vpop.f32.mrb[0].mxu0
    %v104 = vadd.f32 0.0, %v103
    %v105 = vpop.f32.mrb[0].mxu0
    %106 = vdwg.mxu0
    %v108 = vsel %vm33, %v22, 0
    %110 = vmatprep.subr.mxu0 0.0
    %111 = vmatpush1.msra.mxu0 %v25
    %112 = vmatprep.subr.mxu0 0.0
    %113 = vmatpush1.msra.mxu0 %v26
    %114 = vmatprep.subr.mxu0 0.0
    %115 = vmatpush1.msra.mxu0 %v27
    %116 = vmatprep.subr.mxu0 0.0
    %117 = vmatpush1.msra.mxu0 %v28
    %118 = vmatprep.subr.mxu0 0.0
    %119 = vmatpush1.msra.mxu0 0.0
    %120 = vmatprep.subr.mxu0 0.0
    %121 = vmatpush1.msra.mxu0 0.0
    %122 = vmatprep.subr.mxu0 0.0
    %123 = vmatpush1.msra.mxu0 0.0
    %124 = vmatprep.subr.mxu0 0.0
    %125 = vmatpush1.msra.mxu0 0.0
    %126 = vmatprep.subr.mxu0 0.0
    %127 = vmatpush1.msra.mxu0 0.0
    %128 = vmatprep.subr.mxu0 0.0
    %129 = vmatpush1.msra.mxu0 0.0
    %130 = vmatprep.subr.mxu0 0.0
    %131 = vmatpush1.msra.mxu0 0.0
    %132 = vmatprep.subr.mxu0 0.0
    %133 = vmatpush1.msra.mxu0 0.0
    %134 = vmatprep.subr.mxu0 0.0
    %135 = vmatpush1.msra.mxu0 0.0
    %136 = vmatprep.subr.mxu0 0.0
    %137 = vmatpush1.msra.mxu0 0.0
    %138 = vmatprep.subr.mxu0 0.0
    %139 = vmatpush1.msra.mxu0 0.0
    %140 = vmatprep.subr.mxu0 0.0
    %141 = vmatpush1.msra.mxu0 0.0
    %142 = vmatprep.subr.mxu0 0.0
    %143 = vmatpush1.msra.mxu0 0.0
    %144 = vmatprep.subr.mxu0 0.0
    %145 = vmatpush1.msra.mxu0 0.0
    %146 = vmatprep.subr.mxu0 0.0
    %147 = vmatpush1.msra.mxu0 0.0
    %148 = vmatprep.subr.mxu0 0.0
    %149 = vmatpush1.msra.mxu0 0.0
    %150 = vmatprep.subr.mxu0 0.0
    %151 = vmatpush1.msra.mxu0 0.0
    %152 = vmatprep.subr.mxu0 0.0
    %153 = vmatpush1.msra.mxu0 0.0
    %154 = vmatprep.subr.mxu0 0.0
    %155 = vmatpush1.msra.mxu0 0.0
    %156 = vmatprep.subr.mxu0 0.0
    %157 = vmatpush1.msra.mxu0 0.0
    %158 = vmatprep.subr.mxu0 0.0
    %159 = vmatpush1.msra.mxu0 0.0
    %160 = vmatprep.subr.mxu0 0.0
    %161 = vmatpush1.msra.mxu0 0.0
    %162 = vmatprep.subr.mxu0 0.0
    %163 = vmatpush1.msra.mxu0 0.0
    %164 = vmatprep.subr.mxu0 0.0
    %165 = vmatpush1.msra.mxu0 0.0
    %166 = vmatprep.subr.mxu0 0.0
    %167 = vmatpush1.msra.mxu0 0.0
    %168 = vmatprep.subr.mxu0 0.0
    %169 = vmatpush1.msra.mxu0 0.0
    %170 = vmatprep.subr.mxu0 0.0
    %171 = vmatpush1.msra.mxu0 0.0
    %172 = vmatprep.subr.mxu0 0.0
    %173 = vmatpush1.msra.mxu0 0.0
    %174 = vmatprep.mubr.f32.mxu0 0.0
    %175 = vmatmul.mubr.f32.gmra.mrb[0].mxu0 %v108
    %v176 = vpop.f32.mrb[0].mxu0
    %v177 = vadd.f32 %v104, %v176
    %v178 = vpop.f32.mrb[0].mxu0
    %179 = vdwg.mxu0
    %v180 = vld [vmem:[%s4] sm:$0x1]
    %v182 = vlaneseq
    %v183 = vshrl.u32 %v182, 7
    %v184 = vsub.s32 0, %v183
    %v185 = vrot.slane %v180, %v184
    %v187 = vadd.f32 %v177, %v185
    %vm188 = vcmask 64512
    %189 = vst.msk [vmem:[#allocation2] sm:$0xff] %vm188, %v187
    // Predicated region
    $region22: #{active_model_forward.1} parent=1 // pred_check
      _
    $region23: #{active_model_forward.1} parent=1 // pred_check_branch
      %191 = sbr.rel (0) target = $region25
    $region24: #{active_model_forward.1} parent=1 // pred_region
      %s193 = ssub.s32 128, 32
      %194 = vsyncadd [#allocation3], %s193
      %s195 = sshll.u32 [#allocation2], 4
      %s196 = int_to_ptr.vmem [resolvable:$true] %s195
      %201 = dma.vmem_to_hbm [thread:$0]  %s196, 32, %s5, [#allocation3], 32, 32, 2
    $region25: #{active_model_forward.1} parent=1 // pred_fallthru
      _
    // Predicated region
    $region26: #{active_model_forward.1} parent=1 // pred_check
      _
    $region27: #{active_model_forward.1} parent=1 // pred_check_branch
      %203 = sbr.rel (0) target = $region29
    $region28: #{active_model_forward.1} parent=1 // pred_region
      %204 = dma.done [#allocation3], 128
    $region29: #{active_model_forward.1} parent=1 // pred_fallthru
      _
    %205 = vsyncpa [#allocation3], 1

</llo_original>
